<compile_context>
chip_gen: v6e
topology: v6e:2x2x1
jax: 0.10.0
libtpu: 0.0.40
codegen_flags: <defaults>
</compile_context>

<pallas_src>
import functools

import jax
import jax.numpy as jnp
from jax.experimental import pallas as pl
from jax.experimental.pallas import tpu as pltpu


def _inverted_residual_kernel(x_ref, wslab_ref, fslab_ref, o_ref, *,
                              H, W, cin, hidden, cout, identity):
    HW = H * W
    nb = x_ref.shape[0]                               # images in this block

    # ---- unpack the two packed side-operand slabs (static sub-slices) ----
    w1 = wslab_ref[0:hidden, 0:cin]                   # (hidden, Cin)   bf16
    w3 = wslab_ref[0:cout, cin:cin + hidden]          # (Cout, hidden)  bf16
    wdw = fslab_ref[0:hidden, 0:9]                    # (hidden, 9)     f32
    b1 = fslab_ref[0:hidden, 9:10]                    # (hidden, 1)     f32
    b2 = fslab_ref[0:hidden, 10:11]                   # (hidden, 1)     f32
    b3 = fslab_ref[0:cout, 11:12]                     # (Cout, 1)       f32

    # ---- edge-validity masks, built once per grid step (full shape so no
    #      re-broadcast inside the tap loop) -------------------------------
    lane = jax.lax.broadcasted_iota(jnp.int32, (hidden, HW), 1)
    if W & (W - 1) == 0:                              # power-of-two fast path
        col = jnp.bitwise_and(lane, W - 1)
    else:
        col = jax.lax.rem(lane, W)
    left_ok = col >= 1                                # x-1 is inside the image
    right_ok = col <= W - 2                           # x+1 is inside the image
    top_ok = lane >= W                                # y-1 is inside the image
    bot_ok = lane < HW - W                            # y+1 is inside the image

    def roll(v, shift):                               # lane rotation on the XLU
        return pltpu.roll(v, shift % HW, axis=1)

    for b in range(nb):                               # static, nb in {1, N}
        xb = x_ref[b]                                 # (Cin, HW) bf16

        # ---- 1x1 expansion conv (bf16 MXU, f32 acc) + bias + ReLU6 ----
        h = jnp.dot(w1, xb, preferred_element_type=jnp.float32)
        h = jnp.clip(h + b1, 0.0, 6.0)                # (hidden, HW) f32

        # ---- 3x3 depthwise conv, stride 1, pad 1 (rolls + edge masks) ----
        # column-shifted, column-masked variants (h at x-1 / x / x+1)
        sxm = jnp.where(left_ok, roll(h, 1), 0.0)
        sxp = jnp.where(right_ok, roll(h, -1), 0.0)
        # per-tap-row combinations, weighted by the per-channel taps
        rows_c = []
        for j in range(3):                            # j = kernel row (dy)
            rows_c.append(wdw[:, 3 * j + 0:3 * j + 1] * sxm
                          + wdw[:, 3 * j + 1:3 * j + 2] * h
                          + wdw[:, 3 * j + 2:3 * j + 3] * sxp)
        # vertical shifts + row masks (kill top/bottom wrap-around)
        acc = (jnp.where(top_ok, roll(rows_c[0], W), 0.0)
               + rows_c[1]
               + jnp.where(bot_ok, roll(rows_c[2], -W), 0.0))
        h2 = jnp.clip(acc + b2, 0.0, 6.0)             # (hidden, HW) f32

        # ---- 1x1 projection conv (bf16 MXU, f32 acc) + bias ----
        out = jnp.dot(w3, h2.astype(jnp.bfloat16),
                      preferred_element_type=jnp.float32) + b3

        if identity:                                  # stride==1 and inp==oup
            out = out + xb.astype(jnp.float32)

        o_ref[b] = out.astype(o_ref.dtype)            # lane-dense 256-lane store


def _default_num_blocks(n_images):
    """2-way parallel grid on 2-TensorCore chips (v7x), single step otherwise."""
    try:
        kind = jax.devices()[0].device_kind.lower()
    except Exception:
        kind = ""
    n_tc = 2 if "7" in kind else 1
    if n_tc > 1 and n_images % n_tc == 0:
        return n_tc
    return 1


def inverted_residual_pallas(x_nchw, params, *, identity=True,
                             num_parallel_blocks=None):
    """x_nchw: (N, Cin, H, W) float32.  Returns (N, Cout, H, W) float32."""
    w1, b1, wdw, b2, w3, b3 = params
    N, Cin, H, W = x_nchw.shape
    hidden = w1.shape[0]
    Cout = w3.shape[0]
    HW = H * W
    assert H >= 2 and W >= 2, "edge-mask construction assumes H, W >= 2"
    if identity:
        assert Cin == Cout

    if num_parallel_blocks is None:
        num_parallel_blocks = _default_num_blocks(N)
    nb = N // num_parallel_blocks                      # images per grid step

    # ---- pack side operands into two lane-dense slabs (3 DMAs total) ----
    rows = max(hidden, Cout)
    wslab = jnp.zeros((rows, Cin + hidden), jnp.float32)
    wslab = wslab.at[:hidden, :Cin].set(w1)
    wslab = wslab.at[:Cout, Cin:Cin + hidden].set(w3)
    wslab = wslab.astype(jnp.bfloat16)                 # MXU operands in bf16

    fslab = jnp.zeros((rows, 12), jnp.float32)
    fslab = fslab.at[:hidden, 0:9].set(wdw)
    fslab = fslab.at[:hidden, 9].set(b1[:, 0])
    fslab = fslab.at[:hidden, 10].set(b2[:, 0])
    fslab = fslab.at[:Cout, 11].set(b3[:, 0])

    # activations as bf16 (halves HBM->VMEM bytes for x; matmul operand dtype)
    x_flat = x_nchw.reshape(N, Cin, HW).astype(jnp.bfloat16)

    kernel = functools.partial(_inverted_residual_kernel, H=H, W=W, cin=Cin,
                               hidden=hidden, cout=Cout, identity=identity)

    out_flat = pl.pallas_call(
        kernel,
        out_shape=jax.ShapeDtypeStruct((N, Cout, HW), jnp.float32),
        grid=(num_parallel_blocks,),
        in_specs=[
            pl.BlockSpec((nb, Cin, HW), lambda g: (g, 0, 0)),          # x
            pl.BlockSpec((rows, Cin + hidden), lambda g: (0, 0)),      # w slab
            pl.BlockSpec((rows, 12), lambda g: (0, 0)),                # f32 slab
        ],
        out_specs=pl.BlockSpec((nb, Cout, HW), lambda g: (g, 0, 0)),
        compiler_params=pltpu.CompilerParams(
            dimension_semantics=("parallel",)),
    )(x_flat, wslab, fslab)

    return out_flat.reshape(N, Cout, H, W)


def inverted_residual_ref(x_nchw, params, *, identity=True,
                          matmul_dtype=jnp.float32):
    """Pure-JAX reference.  matmul_dtype=bf16 reproduces the kernel's
    quantization points (x, w1, w3, h2) for a tight comparison; f32 gives the
    original module semantics."""
    w1, b1, wdw, b2, w3, b3 = params
    N, Cin, H, W = x_nchw.shape
    hidden = w1.shape[0]
    Cout = w3.shape[0]
    hp = jax.lax.Precision.HIGHEST
    q = lambda a: a.astype(matmul_dtype).astype(jnp.float32)

    xq = q(x_nchw)
    xf = xq.reshape(N, Cin, H * W)
    h = jnp.einsum('hc,ncp->nhp', q(w1), xf, precision=hp) + b1
    h = jnp.clip(h, 0.0, 6.0).reshape(N, hidden, H, W)
    hpad = jnp.pad(h, ((0, 0), (0, 0), (1, 1), (1, 1)))
    acc = jnp.zeros((N, hidden, H, W), jnp.float32)
    for dy in range(3):
        for dx in range(3):
            acc = acc + (hpad[:, :, dy:dy + H, dx:dx + W]
                         * wdw[:, dy * 3 + dx].reshape(1, hidden, 1, 1))
    h2 = jnp.clip(acc.reshape(N, hidden, H * W) + b2, 0.0, 6.0)
    out = jnp.einsum('oh,nhp->nop', q(w3), q(h2), precision=hp) + b3
    out = out.reshape(N, Cout, H, W)
    if identity:
        out = out + xq
    return out


def _make_params(key, inp, hidden, oup):
    ks = jax.random.split(key, 9)

    def bn_fold(kg, kb, c):
        kg1, kg2 = jax.random.split(kg)
        kb1, kb2 = jax.random.split(kb)
        gamma = jax.random.uniform(kg1, (c,), minval=0.5, maxval=1.5)
        var = jax.random.uniform(kg2, (c,), minval=0.5, maxval=1.5)
        beta = 0.1 * jax.random.normal(kb1, (c,))
        mean = 0.1 * jax.random.normal(kb2, (c,))
        scale = gamma / jnp.sqrt(var + 1e-5)
        bias = beta - mean * scale
        return scale.astype(jnp.float32), bias.astype(jnp.float32)

    # conv weights (already in matmul layout), BN scales folded in (f32 host)
    w1_raw = 0.2 * jax.random.normal(ks[0], (hidden, inp))      # 1x1 expand
    wdw_raw = 0.2 * jax.random.normal(ks[1], (hidden, 3, 3))    # depthwise 3x3
    w3_raw = 0.2 * jax.random.normal(ks[2], (oup, hidden))      # 1x1 project
    s1, b1 = bn_fold(ks[3], ks[4], hidden)
    s2, b2 = bn_fold(ks[5], ks[6], hidden)
    s3, b3 = bn_fold(ks[7], ks[8], oup)

    w1 = (w1_raw * s1[:, None]).astype(jnp.float32)                       # (hidden, Cin)
    wdw = (wdw_raw.reshape(hidden, 9) * s2[:, None]).astype(jnp.float32)  # (hidden, 9)
    w3 = (w3_raw * s3[:, None]).astype(jnp.float32)                       # (Cout, hidden)
    return (w1, b1[:, None].astype(jnp.float32), wdw,
            b2[:, None].astype(jnp.float32), w3,
            b3[:, None].astype(jnp.float32))


if __name__ == "__main__":
    # InvertedResidual(inp=8, oup=8, stride=1, expand_ratio=2)
    #   -> hidden_dim = 16, identity residual active.
    N, Cin, H, W = 2, 8, 16, 16
    expand_ratio = 2
    hidden = round(Cin * expand_ratio)
    Cout = 8

    key = jax.random.PRNGKey(0)
    kx, kp = jax.random.split(key)
    x_nchw = jax.random.normal(kx, (N, Cin, H, W), dtype=jnp.float32)
    params = _make_params(kp, Cin, hidden, Cout)

    out = inverted_residual_pallas(x_nchw, params, identity=True)
    out = jax.block_until_ready(out)
    assert out.shape == (N, Cout, H, W)

    # 1) bf16-matched reference (same quantization points as the kernel):
    #    tight-ish check of the roll/mask depthwise structure and residual.
    #    Slack covers occasional 1-ulp bf16 rounding divergence of h2.
    ref_q = inverted_residual_ref(x_nchw, params, identity=True,
                                  matmul_dtype=jnp.bfloat16)
    err_q = float(jnp.max(jnp.abs(out - ref_q)))
    assert jnp.allclose(out, ref_q, atol=7e-2, rtol=2e-2), err_q

    # 2) full-f32 reference (original module semantics): loose tolerance
    #    bounding the intentional bf16-MXU-operand error.
    ref_f = inverted_residual_ref(x_nchw, params, identity=True,
                                  matmul_dtype=jnp.float32)
    err_f = float(jnp.max(jnp.abs(out - ref_f)))
    assert jnp.allclose(out, ref_f, atol=3e-1, rtol=1e-1), err_f

    print("KERNEL_OK")
</pallas_src>

<mosaic_0001>
module attributes {stable_mosaic.version = 11 : i64} {
  func.func @_inverted_residual_kernel(%arg0: i32, %arg1: memref<2x8x256xbf16, #tpu.memory_space<vmem>>, %arg2: memref<16x24xbf16, #tpu.memory_space<vmem>>, %arg3: memref<16x12xf32, #tpu.memory_space<vmem>>, %arg4: memref<2x8x256xf32, #tpu.memory_space<vmem>>) attributes {dimension_semantics = [#tpu.dimension_semantics<parallel>], iteration_bounds = array<i64: 1>, scalar_prefetch = 0 : i64, scratch_operands = 0 : i64, tpu.core_type = #tpu.core_type<tc>, window_params = [{transform_indices = @transform_0, window_bounds = array<i64: 2, 8, 256>}, {pipeline_mode = #tpu.pipeline_mode<synchronous>, transform_indices = @transform_1, window_bounds = array<i64: 16, 24>}, {pipeline_mode = #tpu.pipeline_mode<synchronous>, transform_indices = @transform_2, window_bounds = array<i64: 16, 12>}, {transform_indices = @transform_3, window_bounds = array<i64: 2, 8, 256>}]} {
    %c0 = arith.constant 0 : index
    %c0_0 = arith.constant 0 : index
    %0 = vector.load %arg2[%c0, %c0_0] : memref<16x24xbf16, #tpu.memory_space<vmem>>, vector<16x8xbf16>
    %c0_1 = arith.constant 0 : index
    %c8 = arith.constant 8 : index
    %1 = vector.load %arg2[%c0_1, %c8] : memref<16x24xbf16, #tpu.memory_space<vmem>>, vector<8x16xbf16>
    %c0_2 = arith.constant 0 : index
    %c0_3 = arith.constant 0 : index
    %2 = vector.load %arg3[%c0_2, %c0_3] : memref<16x12xf32, #tpu.memory_space<vmem>>, vector<16x9xf32>
    %c0_4 = arith.constant 0 : index
    %c9 = arith.constant 9 : index
    %3 = vector.load %arg3[%c0_4, %c9] : memref<16x12xf32, #tpu.memory_space<vmem>>, vector<16x1xf32>
    %c0_5 = arith.constant 0 : index
    %c10 = arith.constant 10 : index
    %4 = vector.load %arg3[%c0_5, %c10] : memref<16x12xf32, #tpu.memory_space<vmem>>, vector<16x1xf32>
    %c0_6 = arith.constant 0 : index
    %c11 = arith.constant 11 : index
    %5 = vector.load %arg3[%c0_6, %c11] : memref<16x12xf32, #tpu.memory_space<vmem>>, vector<8x1xf32>
    %6 = tpu.iota {dimensions = array<i32: 1>} : vector<16x256xi32>
    %c15_i32 = arith.constant 15 : i32
    %7 = vector.broadcast %c15_i32 : i32 to vector<16x256xi32>
    %8 = arith.andi %6, %7 : vector<16x256xi32>
    %c1_i32 = arith.constant 1 : i32
    %9 = vector.broadcast %c1_i32 : i32 to vector<16x256xi32>
    %10 = arith.cmpi sge, %8, %9 : vector<16x256xi32>
    %c14_i32 = arith.constant 14 : i32
    %11 = vector.broadcast %c14_i32 : i32 to vector<16x256xi32>
    %12 = arith.cmpi sle, %8, %11 : vector<16x256xi32>
    %c16_i32 = arith.constant 16 : i32
    %13 = vector.broadcast %c16_i32 : i32 to vector<16x256xi32>
    %14 = arith.cmpi sge, %6, %13 : vector<16x256xi32>
    %c240_i32 = arith.constant 240 : i32
    %15 = vector.broadcast %c240_i32 : i32 to vector<16x256xi32>
    %16 = arith.cmpi slt, %6, %15 : vector<16x256xi32>
    %c0_7 = arith.constant 0 : index
    %c0_8 = arith.constant 0 : index
    %c0_9 = arith.constant 0 : index
    %17 = vector.load %arg1[%c0_7, %c0_8, %c0_9] : memref<2x8x256xbf16, #tpu.memory_space<vmem>>, vector<1x8x256xbf16>
    %18 = vector.shape_cast %17 : vector<1x8x256xbf16> to vector<8x256xbf16>
    %cst = arith.constant dense<0.000000e+00> : vector<16x256xf32>
    %19 = tpu.matmul %0, %18, %cst {dimension_numbers = #tpu.dot_dimension_numbers<[1], [0], [0], [1], [0, 0, 1, 1], [], []>} : vector<16x8xbf16>, vector<8x256xbf16>, vector<16x256xf32> -> vector<16x256xf32>
    %20 = vector.broadcast %3 : vector<16x1xf32> to vector<16x256xf32>
    %21 = arith.addf %19, %20 : vector<16x256xf32>
    %cst_10 = arith.constant 0.000000e+00 : f32
    %cst_11 = arith.constant 6.000000e+00 : f32
    %22 = vector.broadcast %cst_10 : f32 to vector<16x256xf32>
    %23 = arith.maximumf %22, %21 : vector<16x256xf32>
    %24 = vector.broadcast %cst_11 : f32 to vector<16x256xf32>
    %25 = arith.minimumf %24, %23 : vector<16x256xf32>
    %c1_i32_12 = arith.constant 1 : i32
    %26 = tpu.dynamic_rotate %25 by %c1_i32_12 dim 1 : vector<16x256xf32>, i32 -> vector<16x256xf32>
    %cst_13 = arith.constant 0.000000e+00 : f32
    %27 = vector.broadcast %cst_13 : f32 to vector<16x256xf32>
    %28 = arith.select %10, %26, %27 : vector<16x256xi1>, vector<16x256xf32>
    %c255_i32 = arith.constant 255 : i32
    %29 = tpu.dynamic_rotate %25 by %c255_i32 dim 1 : vector<16x256xf32>, i32 -> vector<16x256xf32>
    %cst_14 = arith.constant 0.000000e+00 : f32
    %30 = vector.broadcast %cst_14 : f32 to vector<16x256xf32>
    %31 = arith.select %12, %29, %30 : vector<16x256xi1>, vector<16x256xf32>
    %32 = vector.extract_strided_slice %2 {offsets = [0, 0], sizes = [16, 1], strides = [1, 1]} : vector<16x9xf32> to vector<16x1xf32>
    %33 = vector.broadcast %32 : vector<16x1xf32> to vector<16x256xf32>
    %34 = arith.mulf %33, %28 : vector<16x256xf32>
    %35 = vector.extract_strided_slice %2 {offsets = [0, 1], sizes = [16, 1], strides = [1, 1]} : vector<16x9xf32> to vector<16x1xf32>
    %36 = vector.broadcast %35 : vector<16x1xf32> to vector<16x256xf32>
    %37 = arith.mulf %36, %25 : vector<16x256xf32>
    %38 = arith.addf %34, %37 : vector<16x256xf32>
    %39 = vector.extract_strided_slice %2 {offsets = [0, 2], sizes = [16, 1], strides = [1, 1]} : vector<16x9xf32> to vector<16x1xf32>
    %40 = vector.broadcast %39 : vector<16x1xf32> to vector<16x256xf32>
    %41 = arith.mulf %40, %31 : vector<16x256xf32>
    %42 = arith.addf %38, %41 : vector<16x256xf32>
    %43 = vector.extract_strided_slice %2 {offsets = [0, 3], sizes = [16, 1], strides = [1, 1]} : vector<16x9xf32> to vector<16x1xf32>
    %44 = vector.broadcast %43 : vector<16x1xf32> to vector<16x256xf32>
    %45 = arith.mulf %44, %28 : vector<16x256xf32>
    %46 = vector.extract_strided_slice %2 {offsets = [0, 4], sizes = [16, 1], strides = [1, 1]} : vector<16x9xf32> to vector<16x1xf32>
    %47 = vector.broadcast %46 : vector<16x1xf32> to vector<16x256xf32>
    %48 = arith.mulf %47, %25 : vector<16x256xf32>
    %49 = arith.addf %45, %48 : vector<16x256xf32>
    %50 = vector.extract_strided_slice %2 {offsets = [0, 5], sizes = [16, 1], strides = [1, 1]} : vector<16x9xf32> to vector<16x1xf32>
    %51 = vector.broadcast %50 : vector<16x1xf32> to vector<16x256xf32>
    %52 = arith.mulf %51, %31 : vector<16x256xf32>
    %53 = arith.addf %49, %52 : vector<16x256xf32>
    %54 = vector.extract_strided_slice %2 {offsets = [0, 6], sizes = [16, 1], strides = [1, 1]} : vector<16x9xf32> to vector<16x1xf32>
    %55 = vector.broadcast %54 : vector<16x1xf32> to vector<16x256xf32>
    %56 = arith.mulf %55, %28 : vector<16x256xf32>
    %57 = vector.extract_strided_slice %2 {offsets = [0, 7], sizes = [16, 1], strides = [1, 1]} : vector<16x9xf32> to vector<16x1xf32>
    %58 = vector.broadcast %57 : vector<16x1xf32> to vector<16x256xf32>
    %59 = arith.mulf %58, %25 : vector<16x256xf32>
    %60 = arith.addf %56, %59 : vector<16x256xf32>
    %61 = vector.extract_strided_slice %2 {offsets = [0, 8], sizes = [16, 1], strides = [1, 1]} : vector<16x9xf32> to vector<16x1xf32>
    %62 = vector.broadcast %61 : vector<16x1xf32> to vector<16x256xf32>
    %63 = arith.mulf %62, %31 : vector<16x256xf32>
    %64 = arith.addf %60, %63 : vector<16x256xf32>
    %c16_i32_15 = arith.constant 16 : i32
    %65 = tpu.dynamic_rotate %42 by %c16_i32_15 dim 1 : vector<16x256xf32>, i32 -> vector<16x256xf32>
    %cst_16 = arith.constant 0.000000e+00 : f32
    %66 = vector.broadcast %cst_16 : f32 to vector<16x256xf32>
    %67 = arith.select %14, %65, %66 : vector<16x256xi1>, vector<16x256xf32>
    %68 = arith.addf %67, %53 : vector<16x256xf32>
    %c240_i32_17 = arith.constant 240 : i32
    %69 = tpu.dynamic_rotate %64 by %c240_i32_17 dim 1 : vector<16x256xf32>, i32 -> vector<16x256xf32>
    %cst_18 = arith.constant 0.000000e+00 : f32
    %70 = vector.broadcast %cst_18 : f32 to vector<16x256xf32>
    %71 = arith.select %16, %69, %70 : vector<16x256xi1>, vector<16x256xf32>
    %72 = arith.addf %68, %71 : vector<16x256xf32>
    %73 = vector.broadcast %4 : vector<16x1xf32> to vector<16x256xf32>
    %74 = arith.addf %72, %73 : vector<16x256xf32>
    %cst_19 = arith.constant 0.000000e+00 : f32
    %cst_20 = arith.constant 6.000000e+00 : f32
    %75 = vector.broadcast %cst_19 : f32 to vector<16x256xf32>
    %76 = arith.maximumf %75, %74 : vector<16x256xf32>
    %77 = vector.broadcast %cst_20 : f32 to vector<16x256xf32>
    %78 = arith.minimumf %77, %76 : vector<16x256xf32>
    %79 = arith.truncf %78 : vector<16x256xf32> to vector<16x256xbf16>
    %cst_21 = arith.constant dense<0.000000e+00> : vector<8x256xf32>
    %80 = tpu.matmul %1, %79, %cst_21 {dimension_numbers = #tpu.dot_dimension_numbers<[1], [0], [0], [1], [0, 0, 1, 1], [], []>} : vector<8x16xbf16>, vector<16x256xbf16>, vector<8x256xf32> -> vector<8x256xf32>
    %81 = vector.broadcast %5 : vector<8x1xf32> to vector<8x256xf32>
    %82 = arith.addf %80, %81 : vector<8x256xf32>
    %83 = arith.extf %18 : vector<8x256xbf16> to vector<8x256xf32>
    %84 = arith.addf %82, %83 : vector<8x256xf32>
    %c0_22 = arith.constant 0 : index
    %c0_23 = arith.constant 0 : index
    %c0_24 = arith.constant 0 : index
    %85 = vector.load %arg4[%c0_22, %c0_23, %c0_24] : memref<2x8x256xf32, #tpu.memory_space<vmem>>, vector<1x8x256xf32>
    %86 = vector.shape_cast %85 : vector<1x8x256xf32> to vector<8x256xf32>
    %87 = vector.shape_cast %84 : vector<8x256xf32> to vector<1x8x256xf32>
    tpu.vector_store %arg4[%c0_22, %c0_23, %c0_24], %87 {strides = array<i32>} : memref<2x8x256xf32, #tpu.memory_space<vmem>>, vector<1x8x256xf32>,
    %c1 = arith.constant 1 : index
    %c0_25 = arith.constant 0 : index
    %c0_26 = arith.constant 0 : index
    %88 = vector.load %arg1[%c1, %c0_25, %c0_26] : memref<2x8x256xbf16, #tpu.memory_space<vmem>>, vector<1x8x256xbf16>
    %89 = vector.shape_cast %88 : vector<1x8x256xbf16> to vector<8x256xbf16>
    %cst_27 = arith.constant dense<0.000000e+00> : vector<16x256xf32>
    %90 = tpu.matmul %0, %89, %cst_27 {dimension_numbers = #tpu.dot_dimension_numbers<[1], [0], [0], [1], [0, 0, 1, 1], [], []>} : vector<16x8xbf16>, vector<8x256xbf16>, vector<16x256xf32> -> vector<16x256xf32>
    %91 = vector.broadcast %3 : vector<16x1xf32> to vector<16x256xf32>
    %92 = arith.addf %90, %91 : vector<16x256xf32>
    %cst_28 = arith.constant 0.000000e+00 : f32
    %cst_29 = arith.constant 6.000000e+00 : f32
    %93 = vector.broadcast %cst_28 : f32 to vector<16x256xf32>
    %94 = arith.maximumf %93, %92 : vector<16x256xf32>
    %95 = vector.broadcast %cst_29 : f32 to vector<16x256xf32>
    %96 = arith.minimumf %95, %94 : vector<16x256xf32>
    %c1_i32_30 = arith.constant 1 : i32
    %97 = tpu.dynamic_rotate %96 by %c1_i32_30 dim 1 : vector<16x256xf32>, i32 -> vector<16x256xf32>
    %cst_31 = arith.constant 0.000000e+00 : f32
    %98 = vector.broadcast %cst_31 : f32 to vector<16x256xf32>
    %99 = arith.select %10, %97, %98 : vector<16x256xi1>, vector<16x256xf32>
    %c255_i32_32 = arith.constant 255 : i32
    %100 = tpu.dynamic_rotate %96 by %c255_i32_32 dim 1 : vector<16x256xf32>, i32 -> vector<16x256xf32>
    %cst_33 = arith.constant 0.000000e+00 : f32
    %101 = vector.broadcast %cst_33 : f32 to vector<16x256xf32>
    %102 = arith.select %12, %100, %101 : vector<16x256xi1>, vector<16x256xf32>
    %103 = vector.extract_strided_slice %2 {offsets = [0, 0], sizes = [16, 1], strides = [1, 1]} : vector<16x9xf32> to vector<16x1xf32>
    %104 = vector.broadcast %103 : vector<16x1xf32> to vector<16x256xf32>
    %105 = arith.mulf %104, %99 : vector<16x256xf32>
    %106 = vector.extract_strided_slice %2 {offsets = [0, 1], sizes = [16, 1], strides = [1, 1]} : vector<16x9xf32> to vector<16x1xf32>
    %107 = vector.broadcast %106 : vector<16x1xf32> to vector<16x256xf32>
    %108 = arith.mulf %107, %96 : vector<16x256xf32>
    %109 = arith.addf %105, %108 : vector<16x256xf32>
    %110 = vector.extract_strided_slice %2 {offsets = [0, 2], sizes = [16, 1], strides = [1, 1]} : vector<16x9xf32> to vector<16x1xf32>
    %111 = vector.broadcast %110 : vector<16x1xf32> to vector<16x256xf32>
    %112 = arith.mulf %111, %102 : vector<16x256xf32>
    %113 = arith.addf %109, %112 : vector<16x256xf32>
    %114 = vector.extract_strided_slice %2 {offsets = [0, 3], sizes = [16, 1], strides = [1, 1]} : vector<16x9xf32> to vector<16x1xf32>
    %115 = vector.broadcast %114 : vector<16x1xf32> to vector<16x256xf32>
    %116 = arith.mulf %115, %99 : vector<16x256xf32>
    %117 = vector.extract_strided_slice %2 {offsets = [0, 4], sizes = [16, 1], strides = [1, 1]} : vector<16x9xf32> to vector<16x1xf32>
    %118 = vector.broadcast %117 : vector<16x1xf32> to vector<16x256xf32>
    %119 = arith.mulf %118, %96 : vector<16x256xf32>
    %120 = arith.addf %116, %119 : vector<16x256xf32>
    %121 = vector.extract_strided_slice %2 {offsets = [0, 5], sizes = [16, 1], strides = [1, 1]} : vector<16x9xf32> to vector<16x1xf32>
    %122 = vector.broadcast %121 : vector<16x1xf32> to vector<16x256xf32>
    %123 = arith.mulf %122, %102 : vector<16x256xf32>
    %124 = arith.addf %120, %123 : vector<16x256xf32>
    %125 = vector.extract_strided_slice %2 {offsets = [0, 6], sizes = [16, 1], strides = [1, 1]} : vector<16x9xf32> to vector<16x1xf32>
    %126 = vector.broadcast %125 : vector<16x1xf32> to vector<16x256xf32>
    %127 = arith.mulf %126, %99 : vector<16x256xf32>
    %128 = vector.extract_strided_slice %2 {offsets = [0, 7], sizes = [16, 1], strides = [1, 1]} : vector<16x9xf32> to vector<16x1xf32>
    %129 = vector.broadcast %128 : vector<16x1xf32> to vector<16x256xf32>
    %130 = arith.mulf %129, %96 : vector<16x256xf32>
    %131 = arith.addf %127, %130 : vector<16x256xf32>
    %132 = vector.extract_strided_slice %2 {offsets = [0, 8], sizes = [16, 1], strides = [1, 1]} : vector<16x9xf32> to vector<16x1xf32>
    %133 = vector.broadcast %132 : vector<16x1xf32> to vector<16x256xf32>
    %134 = arith.mulf %133, %102 : vector<16x256xf32>
    %135 = arith.addf %131, %134 : vector<16x256xf32>
    %c16_i32_34 = arith.constant 16 : i32
    %136 = tpu.dynamic_rotate %113 by %c16_i32_34 dim 1 : vector<16x256xf32>, i32 -> vector<16x256xf32>
    %cst_35 = arith.constant 0.000000e+00 : f32
    %137 = vector.broadcast %cst_35 : f32 to vector<16x256xf32>
    %138 = arith.select %14, %136, %137 : vector<16x256xi1>, vector<16x256xf32>
    %139 = arith.addf %138, %124 : vector<16x256xf32>
    %c240_i32_36 = arith.constant 240 : i32
    %140 = tpu.dynamic_rotate %135 by %c240_i32_36 dim 1 : vector<16x256xf32>, i32 -> vector<16x256xf32>
    %cst_37 = arith.constant 0.000000e+00 : f32
    %141 = vector.broadcast %cst_37 : f32 to vector<16x256xf32>
    %142 = arith.select %16, %140, %141 : vector<16x256xi1>, vector<16x256xf32>
    %143 = arith.addf %139, %142 : vector<16x256xf32>
    %144 = vector.broadcast %4 : vector<16x1xf32> to vector<16x256xf32>
    %145 = arith.addf %143, %144 : vector<16x256xf32>
    %cst_38 = arith.constant 0.000000e+00 : f32
    %cst_39 = arith.constant 6.000000e+00 : f32
    %146 = vector.broadcast %cst_38 : f32 to vector<16x256xf32>
    %147 = arith.maximumf %146, %145 : vector<16x256xf32>
    %148 = vector.broadcast %cst_39 : f32 to vector<16x256xf32>
    %149 = arith.minimumf %148, %147 : vector<16x256xf32>
    %150 = arith.truncf %149 : vector<16x256xf32> to vector<16x256xbf16>
    %cst_40 = arith.constant dense<0.000000e+00> : vector<8x256xf32>
    %151 = tpu.matmul %1, %150, %cst_40 {dimension_numbers = #tpu.dot_dimension_numbers<[1], [0], [0], [1], [0, 0, 1, 1], [], []>} : vector<8x16xbf16>, vector<16x256xbf16>, vector<8x256xf32> -> vector<8x256xf32>
    %152 = vector.broadcast %5 : vector<8x1xf32> to vector<8x256xf32>
    %153 = arith.addf %151, %152 : vector<8x256xf32>
    %154 = arith.extf %89 : vector<8x256xbf16> to vector<8x256xf32>
    %155 = arith.addf %153, %154 : vector<8x256xf32>
    %c1_41 = arith.constant 1 : index
    %c0_42 = arith.constant 0 : index
    %c0_43 = arith.constant 0 : index
    %156 = vector.load %arg4[%c1_41, %c0_42, %c0_43] : memref<2x8x256xf32, #tpu.memory_space<vmem>>, vector<1x8x256xf32>
    %157 = vector.shape_cast %156 : vector<1x8x256xf32> to vector<8x256xf32>
    %158 = vector.shape_cast %155 : vector<8x256xf32> to vector<1x8x256xf32>
    tpu.vector_store %arg4[%c1_41, %c0_42, %c0_43], %158 {strides = array<i32>} : memref<2x8x256xf32, #tpu.memory_space<vmem>>, vector<1x8x256xf32>,
    return
  }
  func.func @transform_0(%arg0: i32) -> (i32, i32, i32) {
    %c0_i32 = arith.constant 0 : i32
    %c0_i32_0 = arith.constant 0 : i32
    %c0_i32_1 = arith.constant 0 : i32
    return %arg0, %c0_i32, %c0_i32_0 : i32, i32, i32
  }
  func.func @transform_1(%arg0: i32) -> (i32, i32) {
    %c0_i32 = arith.constant 0 : i32
    %c0_i32_0 = arith.constant 0 : i32
    %c0_i32_1 = arith.constant 0 : i32
    return %c0_i32, %c0_i32_0 : i32, i32
  }
  func.func @transform_2(%arg0: i32) -> (i32, i32) {
    %c0_i32 = arith.constant 0 : i32
    %c0_i32_0 = arith.constant 0 : i32
    %c0_i32_1 = arith.constant 0 : i32
    return %c0_i32, %c0_i32_0 : i32, i32
  }
  func.func @transform_3(%arg0: i32) -> (i32, i32, i32) {
    %c0_i32 = arith.constant 0 : i32
    %c0_i32_0 = arith.constant 0 : i32
    %c0_i32_1 = arith.constant 0 : i32
    return %arg0, %c0_i32, %c0_i32_0 : i32, i32, i32
  }
}

</mosaic_0001>

<llo_original>
// kernel: tpu_custom_call.1
$region0: #{tpu_custom_call.1}
  #allocation0 [shape = 'u32[]', space=smem, size = 0x4, offset = 0x4, fixed_abs, tag = 'smem constant byte address 0x4 - core index']
  #allocation1 [shape = 'u32[144,128]{1,0:T(1,128)}', space=vmem, size = 0x12000, scoped, tag = 'internal scratch']
  %s0 = inlined_call_operand.hbm [shape: bf16[2,8,256], index: 0, kind: input, shape index: {}]
  %s1 = inlined_call_operand.hbm [shape: bf16[16,24], index: 1, kind: input, shape index: {}]
  %s2 = inlined_call_operand.hbm [shape: f32[16,12], index: 2, kind: input, shape index: {}]
  %s3 = inlined_call_operand.hbm [shape: f32[2,8,256], index: 3, kind: output, shape index: {}]
  %s4 = sld [smem:[#allocation0]]
  $region34: #{tpu_custom_call.1} parent=0
    _
  %s6 = ssub.s32 1, %s4
  %s7 = scalar_select 0, %s6, %s4
  $region1: #{tpu_custom_call.1} parent=0
    #allocation2 [shape = 'u8[8192]{0}', space=vmem, size = 0x2000, scoped, tag = 'input window, operand 0, single buffered']
    #allocation3 [shape = 's32[1]{0}', space=sflag, size = 0x4, scoped, tag = 'scoped memory for tpu_custom_call.1']
    #allocation4 [shape = 's32[1]{0}', space=sflag, size = 0x4, scoped, tag = 'scoped memory for tpu_custom_call.1']
    #allocation5 [shape = 'u8[4096]{0}', space=vmem, size = 0x1000, scoped, tag = 'input window, operand 1, single buffered']
    #allocation6 [shape = 's32[1]{0}', space=sflag, size = 0x4, scoped, tag = 'scoped memory for tpu_custom_call.1']
    #allocation7 [shape = 'u8[8192]{0}', space=vmem, size = 0x2000, scoped, tag = 'input window, operand 2, single buffered']
    #allocation8 [shape = 'u8[16384]{0}', space=vmem, size = 0x4000, scoped, tag = 'output window, operand 0, single buffered']
    %8 = vsyncpa [#allocation3], 0
    %9 = vsyncpa [#allocation6], 0
    %10 = vsyncpa [#allocation4], 0
    // Predicated region
    $region2: #{tpu_custom_call.1} parent=1 // pred_check
      _
    $region3: #{tpu_custom_call.1} parent=1 // pred_check_branch
      %12 = sbr.rel (0) target = $region5
    $region4: #{tpu_custom_call.1} parent=1 // pred_region
      %s14 = ssub.s32 256, 256
      %15 = vsyncadd [#allocation3], %s14
      %s16 = sshll.u32 [#allocation2], 4
      %s17 = int_to_ptr.vmem [resolvable:$true] %s16
      %22 = dma.hbm_to_vmem [thread:$0]  %s0, 256, %s17, [#allocation3], 128, 128, 8
    $region5: #{tpu_custom_call.1} parent=1 // pred_fallthru
      _
    // Predicated region
    $region6: #{tpu_custom_call.1} parent=1 // pred_check
      _
    $region7: #{tpu_custom_call.1} parent=1 // pred_check_branch
      %24 = sbr.rel (0) target = $region9
    $region8: #{tpu_custom_call.1} parent=1 // pred_region
      %s26 = ssub.s32 128, 128
      %27 = vsyncadd [#allocation6], %s26
      %s28 = sshll.u32 [#allocation5], 4
      %s29 = int_to_ptr.vmem [resolvable:$true] %s28
      %34 = dma.hbm_to_vmem [thread:$0]  %s1, 128, %s29, [#allocation6], 64, 64, 4
    $region9: #{tpu_custom_call.1} parent=1 // pred_fallthru
      _
    // Predicated region
    $region10: #{tpu_custom_call.1} parent=1 // pred_check
      _
    $region11: #{tpu_custom_call.1} parent=1 // pred_check_branch
      %36 = sbr.rel (0) target = $region13
    $region12: #{tpu_custom_call.1} parent=1 // pred_region
      %s38 = ssub.s32 256, 256
      %39 = vsyncadd [#allocation6], %s38
      %s40 = sshll.u32 [#allocation7], 4
      %s41 = int_to_ptr.vmem [resolvable:$true] %s40
      %46 = dma.hbm_to_vmem [thread:$0]  %s2, 256, %s41, [#allocation6], 128, 128, 8
    $region13: #{tpu_custom_call.1} parent=1 // pred_fallthru
      _
    // Predicated region
    $region14: #{tpu_custom_call.1} parent=1 // pred_check
      _
    $region15: #{tpu_custom_call.1} parent=1 // pred_check_branch
      %48 = sbr.rel (0) target = $region17
    $region16: #{tpu_custom_call.1} parent=1 // pred_region
      %49 = dma.done [#allocation3], 256
    $region17: #{tpu_custom_call.1} parent=1 // pred_fallthru
      _
    // Predicated region
    $region18: #{tpu_custom_call.1} parent=1 // pred_check
      _
    $region19: #{tpu_custom_call.1} parent=1 // pred_check_branch
      %51 = sbr.rel (0) target = $region21
    $region20: #{tpu_custom_call.1} parent=1 // pred_region
      %52 = dma.done [#allocation6], 128
    $region21: #{tpu_custom_call.1} parent=1 // pred_fallthru
      _
    // Predicated region
    $region22: #{tpu_custom_call.1} parent=1 // pred_check
      _
    $region23: #{tpu_custom_call.1} parent=1 // pred_check_branch
      %54 = sbr.rel (0) target = $region25
    $region24: #{tpu_custom_call.1} parent=1 // pred_region
      %55 = dma.done [#allocation6], 256
    $region25: #{tpu_custom_call.1} parent=1 // pred_fallthru
      _
    %v57 = vld [vmem:[#allocation5] sm:$0xf]
    %v58 = vld [vmem:[#allocation5 + $0x4] sm:$0xf]
    %v59 = vld [vmem:[#allocation7] sm:$0xff]
    %v60 = vld [vmem:[#allocation7 + $0x8] sm:$0xff]
    %v61 = vlaneseq
    %v62 = vand.u32 %v61, 127
    %v63 = vadd.s32 %v62, 128
    %v64 = vand.u32 %v62, 15
    %v65 = vand.u32 %v63, 15
    %vm66 = vcmp.ge.s32.totalorder %v64, 1
    %vm67 = vcmp.ge.s32.totalorder %v65, 1
    %vm68 = vcmp.le.s32.totalorder %v64, 14
    %vm69 = vcmp.le.s32.totalorder %v65, 14
    %vm70 = vcmp.ge.s32.totalorder %v62, 16
    %vm71 = vcmp.ge.s32.totalorder %v63, 16
    %vm72 = vcmp.lt.s32.totalorder %v62, 240
    %vm73 = vcmp.lt.s32.totalorder %v63, 240
    %v74 = vld [vmem:[#allocation2] sm:$0xff]
    %76 = vset.pattern.permute.xlu0 9
    %77 = vperm.xlu0 %76, %v59
    %v78 = vpop.permute.xlu0 %77
    %81 = vset.pattern.permute.xlu0 9
    %82 = vperm.xlu0 %81, %v60
    %v83 = vpop.permute.xlu0 %82
    %v87 = vunpack.c.l.b16 %v57
    %v88 = vunpack.c.l.b16 %v58
    %v89 = vpack.c.b16 %v88, %v87
    %v91 = vunpack.c.l.b16 %v74
    %v92 = vunpack.c.h.b16 %v74
    %v93 = vpack.c.b16 %v91, %v91
    %v94 = vpack.c.b16 %v92, %v92
    %vm95 = vcmask 64512
    %v97 = vsel %vm95, %v89, 0
    %vm99 = vcmask 1043456
    %v101 = vsel %vm99, %v93, 0
    %v104 = vsel %vm99, %v94, 0
    %106 = vmatprep.subr.bf16.mxu0 0
    %107 = vmatpush1.bf16.msra.mxu0 0
    %108 = vmatprep.subr.bf16.mxu0 0
    %109 = vmatpush1.bf16.msra.mxu0 0
    %110 = vmatprep.subr.bf16.mxu0 0
    %111 = vmatpush1.bf16.msra.mxu0 0
    %112 = vmatprep.subr.bf16.mxu0 0
    %113 = vmatpush1.bf16.msra.mxu0 0
    %114 = vmatprep.subr.bf16.mxu0 0
    %115 = vmatpush1.bf16.msra.mxu0 0
    %116 = vmatprep.subr.bf16.mxu0 0
    %117 = vmatpush1.bf16.msra.mxu0 0
    %118 = vmatprep.subr.bf16.mxu0 0
    %119 = vmatpush1.bf16.msra.mxu0 0
    %120 = vmatprep.subr.bf16.mxu0 %v104
    %121 = vmatpush1.bf16.msra.mxu0 %v101
    %122 = vmatprep.subr.bf16.mxu0 0
    %123 = vmatpush2.bf16.msra.mxu0 0
    %124 = vmatprep.subr.bf16.mxu0 0
    %125 = vmatpush2.bf16.msra.mxu0 0
    %126 = vmatprep.subr.bf16.mxu0 0
    %127 = vmatpush2.bf16.msra.mxu0 0
    %128 = vmatprep.subr.bf16.mxu0 0
    %129 = vmatpush2.bf16.msra.mxu0 0
    %130 = vmatprep.subr.bf16.mxu0 0
    %131 = vmatpush2.bf16.msra.mxu0 0
    %132 = vmatprep.subr.bf16.mxu0 0
    %133 = vmatpush2.bf16.msra.mxu0 0
    %134 = vmatprep.subr.bf16.mxu0 0
    %135 = vmatpush2.bf16.msra.mxu0 0
    %136 = vmatprep.subr.bf16.mxu0 0
    %137 = vmatpush2.bf16.msra.mxu0 0
    %138 = vmatprep.mubr.bf16.mxu0 0
    %139 = vmatmul.mubr.bf16.gmra.mxu0 %v97
    %v140 = vpop.f32.mrf.mxu0
    %v141 = vadd.f32 %v78, %v140
    %v142 = vpop.f32.mrf.mxu0
    %v143 = vadd.f32 %v78, %v142
    %v144 = vpop.f32.mrf.mxu0
    %v145 = vadd.f32 %v83, %v144
    %v146 = vpop.f32.mrf.mxu0
    %v147 = vadd.f32 %v83, %v146
    %148 = vdwg.mxu0
    %v149 = vmax.f32 %v141, 0.0
    %v150 = vmax.f32 %v143, 0.0
    %v151 = vmax.f32 %v145, 0.0
    %v152 = vmax.f32 %v147, 0.0
    %v153 = vmin.f32 %v149, 6.0
    %v154 = vmin.f32 %v150, 6.0
    %v155 = vmin.f32 %v151, 6.0
    %v156 = vmin.f32 %v152, 6.0
    %157 = vrot.lane.b32.xlu0 %v153, 1
    %v158 = vpop.permute.xlu0 %157
    %159 = vrot.lane.b32.xlu0 %v155, 1
    %v160 = vpop.permute.xlu0 %159
    %161 = vrot.lane.b32.xlu0 %v154, 1
    %v162 = vpop.permute.xlu0 %161
    %163 = vrot.lane.b32.xlu0 %v156, 1
    %v164 = vpop.permute.xlu0 %163
    %vm165 = vcmp.lt.s32.totalorder %v62, 1
    %v166 = vsel %vm165, %v158, %v162
    %v167 = vsel %vm165, %v160, %v164
    %v168 = vsel %vm165, %v162, %v158
    %v169 = vsel %vm165, %v164, %v160
    %v170 = vsel %vm66, %v168, 0.0
    %v171 = vsel %vm67, %v166, 0.0
    %v172 = vsel %vm66, %v169, 0.0
    %v173 = vsel %vm67, %v167, 0.0
    %174 = vrot.lane.b32.xlu0 %v153, 127
    %v175 = vpop.permute.xlu0 %174
    %176 = vrot.lane.b32.xlu0 %v155, 127
    %v177 = vpop.permute.xlu0 %176
    %178 = vrot.lane.b32.xlu0 %v154, 127
    %v179 = vpop.permute.xlu0 %178
    %180 = vrot.lane.b32.xlu0 %v156, 127
    %v181 = vpop.permute.xlu0 %180
    %vm182 = vcmp.lt.s32.totalorder %v62, 127
    %v183 = vsel %vm182, %v175, %v179
    %v184 = vsel %vm182, %v177, %v181
    %v185 = vsel %vm182, %v179, %v175
    %v186 = vsel %vm182, %v181, %v177
    %v187 = vsel %vm68, %v183, 0.0
    %v188 = vsel %vm69, %v185, 0.0
    %v189 = vsel %vm68, %v184, 0.0
    %v190 = vsel %vm69, %v186, 0.0
    %191 = vset.pattern.permute.xlu0 0
    %192 = vperm.xlu0 %191, %v59
    %v193 = vpop.permute.xlu0 %192
    %195 = vset.pattern.permute.xlu0 0
    %196 = vperm.xlu0 %195, %v60
    %v197 = vpop.permute.xlu0 %196
    %v199 = vmul.f32 %v193, %v170
    %v200 = vmul.f32 %v193, %v171
    %v201 = vmul.f32 %v197, %v172
    %v202 = vmul.f32 %v197, %v173
    %203 = vset.pattern.permute.xlu0 1
    %204 = vperm.xlu0 %203, %v59
    %v205 = vpop.permute.xlu0 %204
    %207 = vset.pattern.permute.xlu0 1
    %208 = vperm.xlu0 %207, %v60
    %v209 = vpop.permute.xlu0 %208
    %v211 = vmul.f32 %v205, %v153
    %v212 = vmul.f32 %v205, %v154
    %v213 = vmul.f32 %v209, %v155
    %v214 = vmul.f32 %v209, %v156
    %v215 = vadd.f32 %v199, %v211
    %v216 = vadd.f32 %v200, %v212
    %v217 = vadd.f32 %v201, %v213
    %v218 = vadd.f32 %v202, %v214
    %219 = vset.pattern.permute.xlu0 2
    %220 = vperm.xlu0 %219, %v59
    %v221 = vpop.permute.xlu0 %220
    %223 = vset.pattern.permute.xlu0 2
    %224 = vperm.xlu0 %223, %v60
    %v225 = vpop.permute.xlu0 %224
    %v227 = vmul.f32 %v221, %v187
    %v228 = vmul.f32 %v221, %v188
    %v229 = vmul.f32 %v225, %v189
    %v230 = vmul.f32 %v225, %v190
    %v231 = vadd.f32 %v215, %v227
    %v232 = vadd.f32 %v216, %v228
    %v233 = vadd.f32 %v217, %v229
    %v234 = vadd.f32 %v218, %v230
    %235 = vset.pattern.permute.xlu0 3
    %236 = vperm.xlu0 %235, %v59
    %v237 = vpop.permute.xlu0 %236
    %239 = vset.pattern.permute.xlu0 3
    %240 = vperm.xlu0 %239, %v60
    %v241 = vpop.permute.xlu0 %240
    %v243 = vmul.f32 %v237, %v170
    %v244 = vmul.f32 %v237, %v171
    %v245 = vmul.f32 %v241, %v172
    %v246 = vmul.f32 %v241, %v173
    %247 = vset.pattern.permute.xlu0 4
    %248 = vperm.xlu0 %247, %v59
    %v249 = vpop.permute.xlu0 %248
    %251 = vset.pattern.permute.xlu0 4
    %252 = vperm.xlu0 %251, %v60
    %v253 = vpop.permute.xlu0 %252
    %v255 = vmul.f32 %v249, %v153
    %v256 = vmul.f32 %v249, %v154
    %v257 = vmul.f32 %v253, %v155
    %v258 = vmul.f32 %v253, %v156
    %v259 = vadd.f32 %v243, %v255
    %v260 = vadd.f32 %v244, %v256
    %v261 = vadd.f32 %v245, %v257
    %v262 = vadd.f32 %v246, %v258
    %263 = vset.pattern.permute.xlu0 5
    %264 = vperm.xlu0 %263, %v59
    %v265 = vpop.permute.xlu0 %264
    %267 = vset.pattern.permute.xlu0 5
    %268 = vperm.xlu0 %267, %v60
    %v269 = vpop.permute.xlu0 %268
    %v271 = vmul.f32 %v265, %v187
    %v272 = vmul.f32 %v265, %v188
    %v273 = vmul.f32 %v269, %v189
    %v274 = vmul.f32 %v269, %v190
    %v275 = vadd.f32 %v259, %v271
    %v276 = vadd.f32 %v260, %v272
    %v277 = vadd.f32 %v261, %v273
    %v278 = vadd.f32 %v262, %v274
    %279 = vset.pattern.permute.xlu0 6
    %280 = vperm.xlu0 %279, %v59
    %v281 = vpop.permute.xlu0 %280
    %283 = vset.pattern.permute.xlu0 6
    %284 = vperm.xlu0 %283, %v60
    %v285 = vpop.permute.xlu0 %284
    %v287 = vmul.f32 %v281, %v170
    %v288 = vmul.f32 %v281, %v171
    %v289 = vmul.f32 %v285, %v172
    %v290 = vmul.f32 %v285, %v173
    %291 = vset.pattern.permute.xlu0 7
    %292 = vperm.xlu0 %291, %v59
    %v293 = vpop.permute.xlu0 %292
    %295 = vset.pattern.permute.xlu0 7
    %296 = vperm.xlu0 %295, %v60
    %v297 = vpop.permute.xlu0 %296
    %v299 = vmul.f32 %v293, %v153
    %v300 = vmul.f32 %v293, %v154
    %v301 = vmul.f32 %v297, %v155
    %v302 = vmul.f32 %v297, %v156
    %v303 = vadd.f32 %v287, %v299
    %v304 = vadd.f32 %v288, %v300
    %v305 = vadd.f32 %v289, %v301
    %v306 = vadd.f32 %v290, %v302
    %307 = vset.pattern.permute.xlu0 8
    %308 = vperm.xlu0 %307, %v59
    %v309 = vpop.permute.xlu0 %308
    %311 = vset.pattern.permute.xlu0 8
    %312 = vperm.xlu0 %311, %v60
    %v313 = vpop.permute.xlu0 %312
    %v315 = vmul.f32 %v309, %v187
    %v316 = vmul.f32 %v309, %v188
    %v317 = vmul.f32 %v313, %v189
    %v318 = vmul.f32 %v313, %v190
    %v319 = vadd.f32 %v303, %v315
    %v320 = vadd.f32 %v304, %v316
    %v321 = vadd.f32 %v305, %v317
    %v322 = vadd.f32 %v306, %v318
    %323 = vrot.lane.b32.xlu0 %v231, 16
    %v324 = vpop.permute.xlu0 %323
    %325 = vrot.lane.b32.xlu0 %v233, 16
    %v326 = vpop.permute.xlu0 %325
    %327 = vrot.lane.b32.xlu0 %v232, 16
    %v328 = vpop.permute.xlu0 %327
    %329 = vrot.lane.b32.xlu0 %v234, 16
    %v330 = vpop.permute.xlu0 %329
    %vm331 = vcmp.lt.s32.totalorder %v62, 16
    %v332 = vsel %vm331, %v324, %v328
    %v333 = vsel %vm331, %v326, %v330
    %v334 = vsel %vm331, %v328, %v324
    %v335 = vsel %vm331, %v330, %v326
    %v336 = vsel %vm70, %v334, 0.0
    %v337 = vsel %vm71, %v332, 0.0
    %v338 = vsel %vm70, %v335, 0.0
    %v339 = vsel %vm71, %v333, 0.0
    %v340 = vadd.f32 %v336, %v275
    %v341 = vadd.f32 %v337, %v276
    %v342 = vadd.f32 %v338, %v277
    %v343 = vadd.f32 %v339, %v278
    %344 = vrot.lane.b32.xlu0 %v319, 112
    %v345 = vpop.permute.xlu0 %344
    %346 = vrot.lane.b32.xlu0 %v321, 112
    %v347 = vpop.permute.xlu0 %346
    %348 = vrot.lane.b32.xlu0 %v320, 112
    %v349 = vpop.permute.xlu0 %348
    %350 = vrot.lane.b32.xlu0 %v322, 112
    %v351 = vpop.permute.xlu0 %350
    %vm352 = vcmp.lt.s32.totalorder %v62, 112
    %v353 = vsel %vm352, %v345, %v349
    %v354 = vsel %vm352, %v347, %v351
    %v355 = vsel %vm352, %v349, %v345
    %v356 = vsel %vm352, %v351, %v347
    %v357 = vsel %vm72, %v353, 0.0
    %v358 = vsel %vm73, %v355, 0.0
    %v359 = vsel %vm72, %v354, 0.0
    %v360 = vsel %vm73, %v356, 0.0
    %v361 = vadd.f32 %v340, %v357
    %v362 = vadd.f32 %v341, %v358
    %v363 = vadd.f32 %v342, %v359
    %v364 = vadd.f32 %v343, %v360
    %365 = vset.pattern.permute.xlu0 10
    %366 = vperm.xlu0 %365, %v59
    %v367 = vpop.permute.xlu0 %366
    %369 = vset.pattern.permute.xlu0 10
    %370 = vperm.xlu0 %369, %v60
    %v371 = vpop.permute.xlu0 %370
    %v373 = vadd.f32 %v361, %v367
    %v374 = vadd.f32 %v362, %v367
    %v375 = vadd.f32 %v363, %v371
    %v376 = vadd.f32 %v364, %v371
    %v377 = vmax.f32 %v373, 0.0
    %v378 = vmax.f32 %v374, 0.0
    %v379 = vmax.f32 %v375, 0.0
    %v380 = vmax.f32 %v376, 0.0
    %v381 = vmin.f32 %v377, 6.0
    %v382 = vmin.f32 %v378, 6.0
    %v383 = vmin.f32 %v379, 6.0
    %v384 = vmin.f32 %v380, 6.0
    %v385 = vpack.c.bf16 %v383, %v381
    %v386 = vpack.c.bf16 %v384, %v382
    %387 = vset.pattern.permute.xlu0 11
    %388 = vperm.xlu0 %387, %v59
    %v389 = vpop.permute.xlu0 %388
    %v391 = vpack.c.b16 %v87, %v87
    %392 = vrot.lane.b32.xlu0 %v391, 120
    %v393 = vpop.permute.xlu0 %392
    %vm394 = vcmask 130048
    %v396 = vsel %vm394, %v393, 0
    %398 = vmatprep.subr.bf16.mxu0 0
    %399 = vmatpush1.bf16.msra.mxu0 0
    %400 = vmatprep.subr.bf16.mxu0 0
    %401 = vmatpush1.bf16.msra.mxu0 0
    %402 = vmatprep.subr.bf16.mxu0 0
    %403 = vmatpush1.bf16.msra.mxu0 0
    %404 = vmatprep.subr.bf16.mxu0 0
    %405 = vmatpush1.bf16.msra.mxu0 0
    %406 = vmatprep.subr.bf16.mxu0 0
    %407 = vmatpush1.bf16.msra.mxu0 0
    %408 = vmatprep.subr.bf16.mxu0 0
    %409 = vmatpush1.bf16.msra.mxu0 0
    %410 = vmatprep.subr.bf16.mxu0 0
    %411 = vmatpush1.bf16.msra.mxu0 0
    %412 = vmatprep.subr.bf16.mxu0 %v386
    %413 = vmatpush1.bf16.msra.mxu0 %v385
    %414 = vmatprep.subr.bf16.mxu0 0
    %415 = vmatpush2.bf16.msra.mxu0 0
    %416 = vmatprep.subr.bf16.mxu0 0
    %417 = vmatpush2.bf16.msra.mxu0 0
    %418 = vmatprep.subr.bf16.mxu0 0
    %419 = vmatpush2.bf16.msra.mxu0 0
    %420 = vmatprep.subr.bf16.mxu0 0
    %421 = vmatpush2.bf16.msra.mxu0 0
    %422 = vmatprep.subr.bf16.mxu0 0
    %423 = vmatpush2.bf16.msra.mxu0 0
    %424 = vmatprep.subr.bf16.mxu0 0
    %425 = vmatpush2.bf16.msra.mxu0 0
    %426 = vmatprep.subr.bf16.mxu0 0
    %427 = vmatpush2.bf16.msra.mxu0 0
    %428 = vmatprep.subr.bf16.mxu0 0
    %429 = vmatpush2.bf16.msra.mxu0 0
    %430 = vmatprep.mubr.bf16.mxu0 0
    %431 = vmatmul.mubr.bf16.gmra.mxu0 %v396
    %v432 = vpop.f32.mrf.mxu0
    %v433 = vadd.f32 %v389, %v432
    %v434 = vpop.f32.mrf.mxu0
    %v435 = vadd.f32 %v389, %v434
    %v436 = vpop.f32.mrf.mxu0
    %v437 = vpop.f32.mrf.mxu0
    %438 = vdwg.mxu0
    %v439 = vunpack.c.l.bf16 %v74
    %v440 = vunpack.c.h.bf16 %v74
    %v441 = vadd.f32 %v433, %v439
    %v442 = vadd.f32 %v435, %v440
    %443 = vst [vmem:[#allocation8] sm:$0xff] %v441
    %444 = vst [vmem:[#allocation8 + $0x8] sm:$0xff] %v442
    %s445 = scalar_lea.vmem [#allocation2], 8
    %v446 = vld [vmem:[%s445] sm:$0xff]
    %v448 = vunpack.c.l.b16 %v446
    %v449 = vunpack.c.h.b16 %v446
    %v450 = vpack.c.b16 %v448, %v448
    %v451 = vpack.c.b16 %v449, %v449
    %v453 = vsel %vm99, %v450, 0
    %v456 = vsel %vm99, %v451, 0
    %458 = vmatprep.subr.bf16.mxu0 0
    %459 = vmatpush1.bf16.msra.mxu0 0
    %460 = vmatprep.subr.bf16.mxu0 0
    %461 = vmatpush1.bf16.msra.mxu0 0
    %462 = vmatprep.subr.bf16.mxu0 0
    %463 = vmatpush1.bf16.msra.mxu0 0
    %464 = vmatprep.subr.bf16.mxu0 0
    %465 = vmatpush1.bf16.msra.mxu0 0
    %466 = vmatprep.subr.bf16.mxu0 0
    %467 = vmatpush1.bf16.msra.mxu0 0
    %468 = vmatprep.subr.bf16.mxu0 0
    %469 = vmatpush1.bf16.msra.mxu0 0
    %470 = vmatprep.subr.bf16.mxu0 0
    %471 = vmatpush1.bf16.msra.mxu0 0
    %472 = vmatprep.subr.bf16.mxu0 %v456
    %473 = vmatpush1.bf16.msra.mxu0 %v453
    %474 = vmatprep.subr.bf16.mxu0 0
    %475 = vmatpush2.bf16.msra.mxu0 0
    %476 = vmatprep.subr.bf16.mxu0 0
    %477 = vmatpush2.bf16.msra.mxu0 0
    %478 = vmatprep.subr.bf16.mxu0 0
    %479 = vmatpush2.bf16.msra.mxu0 0
    %480 = vmatprep.subr.bf16.mxu0 0
    %481 = vmatpush2.bf16.msra.mxu0 0
    %482 = vmatprep.subr.bf16.mxu0 0
    %483 = vmatpush2.bf16.msra.mxu0 0
    %484 = vmatprep.subr.bf16.mxu0 0
    %485 = vmatpush2.bf16.msra.mxu0 0
    %486 = vmatprep.subr.bf16.mxu0 0
    %487 = vmatpush2.bf16.msra.mxu0 0
    %488 = vmatprep.subr.bf16.mxu0 0
    %489 = vmatpush2.bf16.msra.mxu0 0
    %490 = vmatprep.mubr.bf16.mxu0 0
    %491 = vmatmul.mubr.bf16.gmra.mxu0 %v97
    %v492 = vpop.f32.mrf.mxu0
    %v493 = vadd.f32 %v78, %v492
    %v494 = vpop.f32.mrf.mxu0
    %v495 = vadd.f32 %v78, %v494
    %v496 = vpop.f32.mrf.mxu0
    %v497 = vadd.f32 %v83, %v496
    %v498 = vpop.f32.mrf.mxu0
    %v499 = vadd.f32 %v83, %v498
    %500 = vdwg.mxu0
    %v501 = vmax.f32 %v493, 0.0
    %v502 = vmax.f32 %v495, 0.0
    %v503 = vmax.f32 %v497, 0.0
    %v504 = vmax.f32 %v499, 0.0
    %v505 = vmin.f32 %v501, 6.0
    %v506 = vmin.f32 %v502, 6.0
    %v507 = vmin.f32 %v503, 6.0
    %v508 = vmin.f32 %v504, 6.0
    %509 = vrot.lane.b32.xlu0 %v505, 1
    %v510 = vpop.permute.xlu0 %509
    %511 = vrot.lane.b32.xlu0 %v507, 1
    %v512 = vpop.permute.xlu0 %511
    %513 = vrot.lane.b32.xlu0 %v506, 1
    %v514 = vpop.permute.xlu0 %513
    %515 = vrot.lane.b32.xlu0 %v508, 1
    %v516 = vpop.permute.xlu0 %515
    %v517 = vsel %vm165, %v510, %v514
    %v518 = vsel %vm165, %v512, %v516
    %v519 = vsel %vm165, %v514, %v510
    %v520 = vsel %vm165, %v516, %v512
    %v521 = vsel %vm66, %v519, 0.0
    %v522 = vsel %vm67, %v517, 0.0
    %v523 = vsel %vm66, %v520, 0.0
    %v524 = vsel %vm67, %v518, 0.0
    %525 = vrot.lane.b32.xlu0 %v505, 127
    %v526 = vpop.permute.xlu0 %525
    %527 = vrot.lane.b32.xlu0 %v507, 127
    %v528 = vpop.permute.xlu0 %527
    %529 = vrot.lane.b32.xlu0 %v506, 127
    %v530 = vpop.permute.xlu0 %529
    %531 = vrot.lane.b32.xlu0 %v508, 127
    %v532 = vpop.permute.xlu0 %531
    %v533 = vsel %vm182, %v526, %v530
    %v534 = vsel %vm182, %v528, %v532
    %v535 = vsel %vm182, %v530, %v526
    %v536 = vsel %vm182, %v532, %v528
    %v537 = vsel %vm68, %v533, 0.0
    %v538 = vsel %vm69, %v535, 0.0
    %v539 = vsel %vm68, %v534, 0.0
    %v540 = vsel %vm69, %v536, 0.0
    %v541 = vmul.f32 %v193, %v521
    %v542 = vmul.f32 %v193, %v522
    %v543 = vmul.f32 %v197, %v523
    %v544 = vmul.f32 %v197, %v524
    %v545 = vmul.f32 %v205, %v505
    %v546 = vmul.f32 %v205, %v506
    %v547 = vmul.f32 %v209, %v507
    %v548 = vmul.f32 %v209, %v508
    %v549 = vadd.f32 %v541, %v545
    %v550 = vadd.f32 %v542, %v546
    %v551 = vadd.f32 %v543, %v547
    %v552 = vadd.f32 %v544, %v548
    %v553 = vmul.f32 %v221, %v537
    %v554 = vmul.f32 %v221, %v538
    %v555 = vmul.f32 %v225, %v539
    %v556 = vmul.f32 %v225, %v540
    %v557 = vadd.f32 %v549, %v553
    %v558 = vadd.f32 %v550, %v554
    %v559 = vadd.f32 %v551, %v555
    %v560 = vadd.f32 %v552, %v556
    %v561 = vmul.f32 %v237, %v521
    %v562 = vmul.f32 %v237, %v522
    %v563 = vmul.f32 %v241, %v523
    %v564 = vmul.f32 %v241, %v524
    %v565 = vmul.f32 %v249, %v505
    %v566 = vmul.f32 %v249, %v506
    %v567 = vmul.f32 %v253, %v507
    %v568 = vmul.f32 %v253, %v508
    %v569 = vadd.f32 %v561, %v565
    %v570 = vadd.f32 %v562, %v566
    %v571 = vadd.f32 %v563, %v567
    %v572 = vadd.f32 %v564, %v568
    %v573 = vmul.f32 %v265, %v537
    %v574 = vmul.f32 %v265, %v538
    %v575 = vmul.f32 %v269, %v539
    %v576 = vmul.f32 %v269, %v540
    %v577 = vadd.f32 %v569, %v573
    %v578 = vadd.f32 %v570, %v574
    %v579 = vadd.f32 %v571, %v575
    %v580 = vadd.f32 %v572, %v576
    %v581 = vmul.f32 %v281, %v521
    %v582 = vmul.f32 %v281, %v522
    %v583 = vmul.f32 %v285, %v523
    %v584 = vmul.f32 %v285, %v524
    %v585 = vmul.f32 %v293, %v505
    %v586 = vmul.f32 %v293, %v506
    %v587 = vmul.f32 %v297, %v507
    %v588 = vmul.f32 %v297, %v508
    %v589 = vadd.f32 %v581, %v585
    %v590 = vadd.f32 %v582, %v586
    %v591 = vadd.f32 %v583, %v587
    %v592 = vadd.f32 %v584, %v588
    %v593 = vmul.f32 %v309, %v537
    %v594 = vmul.f32 %v309, %v538
    %v595 = vmul.f32 %v313, %v539
    %v596 = vmul.f32 %v313, %v540
    %v597 = vadd.f32 %v589, %v593
    %v598 = vadd.f32 %v590, %v594
    %v599 = vadd.f32 %v591, %v595
    %v600 = vadd.f32 %v592, %v596
    %601 = vrot.lane.b32.xlu0 %v557, 16
    %v602 = vpop.permute.xlu0 %601
    %603 = vrot.lane.b32.xlu0 %v559, 16
    %v604 = vpop.permute.xlu0 %603
    %605 = vrot.lane.b32.xlu0 %v558, 16
    %v606 = vpop.permute.xlu0 %605
    %607 = vrot.lane.b32.xlu0 %v560, 16
    %v608 = vpop.permute.xlu0 %607
    %v609 = vsel %vm331, %v602, %v606
    %v610 = vsel %vm331, %v604, %v608
    %v611 = vsel %vm331, %v606, %v602
    %v612 = vsel %vm331, %v608, %v604
    %v613 = vsel %vm70, %v611, 0.0
    %v614 = vsel %vm71, %v609, 0.0
    %v615 = vsel %vm70, %v612, 0.0
    %v616 = vsel %vm71, %v610, 0.0
    %v617 = vadd.f32 %v613, %v577
    %v618 = vadd.f32 %v614, %v578
    %v619 = vadd.f32 %v615, %v579
    %v620 = vadd.f32 %v616, %v580
    %621 = vrot.lane.b32.xlu0 %v597, 112
    %v622 = vpop.permute.xlu0 %621
    %623 = vrot.lane.b32.xlu0 %v599, 112
    %v624 = vpop.permute.xlu0 %623
    %625 = vrot.lane.b32.xlu0 %v598, 112
    %v626 = vpop.permute.xlu0 %625
    %627 = vrot.lane.b32.xlu0 %v600, 112
    %v628 = vpop.permute.xlu0 %627
    %v629 = vsel %vm352, %v622, %v626
    %v630 = vsel %vm352, %v624, %v628
    %v631 = vsel %vm352, %v626, %v622
    %v632 = vsel %vm352, %v628, %v624
    %v633 = vsel %vm72, %v629, 0.0
    %v634 = vsel %vm73, %v631, 0.0
    %v635 = vsel %vm72, %v630, 0.0
    %v636 = vsel %vm73, %v632, 0.0
    %v637 = vadd.f32 %v617, %v633
    %v638 = vadd.f32 %v618, %v634
    %v639 = vadd.f32 %v619, %v635
    %v640 = vadd.f32 %v620, %v636
    %v641 = vadd.f32 %v637, %v367
    %v642 = vadd.f32 %v638, %v367
    %v643 = vadd.f32 %v639, %v371
    %v644 = vadd.f32 %v640, %v371
    %v645 = vmax.f32 %v641, 0.0
    %v646 = vmax.f32 %v642, 0.0
    %v647 = vmax.f32 %v643, 0.0
    %v648 = vmax.f32 %v644, 0.0
    %v649 = vmin.f32 %v645, 6.0
    %v650 = vmin.f32 %v646, 6.0
    %v651 = vmin.f32 %v647, 6.0
    %v652 = vmin.f32 %v648, 6.0
    %v653 = vpack.c.bf16 %v651, %v649
    %v654 = vpack.c.bf16 %v652, %v650
    %655 = vmatprep.subr.bf16.mxu0 0
    %656 = vmatpush1.bf16.msra.mxu0 0
    %657 = vmatprep.subr.bf16.mxu0 0
    %658 = vmatpush1.bf16.msra.mxu0 0
    %659 = vmatprep.subr.bf16.mxu0 0
    %660 = vmatpush1.bf16.msra.mxu0 0
    %661 = vmatprep.subr.bf16.mxu0 0
    %662 = vmatpush1.bf16.msra.mxu0 0
    %663 = vmatprep.subr.bf16.mxu0 0
    %664 = vmatpush1.bf16.msra.mxu0 0
    %665 = vmatprep.subr.bf16.mxu0 0
    %666 = vmatpush1.bf16.msra.mxu0 0
    %667 = vmatprep.subr.bf16.mxu0 0
    %668 = vmatpush1.bf16.msra.mxu0 0
    %669 = vmatprep.subr.bf16.mxu0 %v654
    %670 = vmatpush1.bf16.msra.mxu0 %v653
    %671 = vmatprep.subr.bf16.mxu0 0
    %672 = vmatpush2.bf16.msra.mxu0 0
    %673 = vmatprep.subr.bf16.mxu0 0
    %674 = vmatpush2.bf16.msra.mxu0 0
    %675 = vmatprep.subr.bf16.mxu0 0
    %676 = vmatpush2.bf16.msra.mxu0 0
    %677 = vmatprep.subr.bf16.mxu0 0
    %678 = vmatpush2.bf16.msra.mxu0 0
    %679 = vmatprep.subr.bf16.mxu0 0
    %680 = vmatpush2.bf16.msra.mxu0 0
    %681 = vmatprep.subr.bf16.mxu0 0
    %682 = vmatpush2.bf16.msra.mxu0 0
    %683 = vmatprep.subr.bf16.mxu0 0
    %684 = vmatpush2.bf16.msra.mxu0 0
    %685 = vmatprep.subr.bf16.mxu0 0
    %686 = vmatpush2.bf16.msra.mxu0 0
    %687 = vmatprep.mubr.bf16.mxu0 0
    %688 = vmatmul.mubr.bf16.gmra.mxu0 %v396
    %v689 = vpop.f32.mrf.mxu0
    %v690 = vadd.f32 %v389, %v689
    %v691 = vpop.f32.mrf.mxu0
    %v692 = vadd.f32 %v389, %v691
    %v693 = vpop.f32.mrf.mxu0
    %v694 = vpop.f32.mrf.mxu0
    %695 = vdwg.mxu0
    %v696 = vunpack.c.l.bf16 %v446
    %v697 = vunpack.c.h.bf16 %v446
    %v698 = vadd.f32 %v690, %v696
    %v699 = vadd.f32 %v692, %v697
    %s700 = scalar_lea.vmem [#allocation8], 16
    %701 = vst [vmem:[%s700] sm:$0xff] %v698
    %702 = vst [vmem:[%s700 + $0x8] sm:$0xff] %v699
    // Predicated region
    $region26: #{tpu_custom_call.1} parent=1 // pred_check
      _
    $region27: #{tpu_custom_call.1} parent=1 // pred_check_branch
      %704 = sbr.rel (0) target = $region29
    $region28: #{tpu_custom_call.1} parent=1 // pred_region
      %s706 = ssub.s32 512, 512
      %707 = vsyncadd [#allocation4], %s706
      %s708 = sshll.u32 [#allocation8], 4
      %s709 = int_to_ptr.vmem [resolvable:$true] %s708
      %714 = dma.vmem_to_hbm [thread:$0]  %s709, 512, %s3, [#allocation4], 256, 256, 16
    $region29: #{tpu_custom_call.1} parent=1 // pred_fallthru
      _
    // Predicated region
    $region30: #{tpu_custom_call.1} parent=1 // pred_check
      _
    $region31: #{tpu_custom_call.1} parent=1 // pred_check_branch
      %716 = sbr.rel (0) target = $region33
    $region32: #{tpu_custom_call.1} parent=1 // pred_region
      %717 = dma.done [#allocation4], 512
    $region33: #{tpu_custom_call.1} parent=1 // pred_fallthru
      _
    %718 = vsyncpa [#allocation3], 1
    %719 = vsyncpa [#allocation6], 1
    %720 = vsyncpa [#allocation4], 1

</llo_original>
